<compile_context>
chip_gen: v7x
topology: tpu7x:2x2x1
jax: 0.10.0
libtpu: 0.0.40
codegen_flags: <defaults>
</compile_context>

<pallas_src>
import functools
import math

import jax
import jax.numpy as jnp
from jax import lax
from jax.experimental import pallas as pl
from jax.experimental.pallas import tpu as pltpu

_LANES = 128
_NEG_FILL = -1e30   # exp(-1e30) == 0 in f32 -> padded positions drop out of the cumsum


def _round_up(x, m):
    return ((x + m - 1) // m) * m


def _round_down(x, m):
    return (x // m) * m


# ------------------------- lane-dense kernel (D == 1) --------------------------

def _lane_dense_kernel(y_ref, e_ref, out_ref,
                       triu_ref, tril_ref, carry_ref, acc_ref,
                       *, rows, t_sub):
    i = pl.program_id(0)
    blk = y_ref.shape[0]            # rows per grid step (static, multiple of t_sub)
    k_sub = blk // t_sub            # static sub-tile count

    @pl.when(i == 0)
    def _init():
        # Within-row inclusive prefix operator (lane l' contributes to lane l if l' <= l).
        r = lax.broadcasted_iota(jnp.int32, (_LANES, _LANES), 0)
        c = lax.broadcasted_iota(jnp.int32, (_LANES, _LANES), 1)
        triu_ref[...] = (r <= c).astype(jnp.float32)
        # Across-row strict (exclusive) prefix operator on per-row totals.
        rr = lax.broadcasted_iota(jnp.int32, (t_sub, t_sub), 0)
        cc = lax.broadcasted_iota(jnp.int32, (t_sub, t_sub), 1)
        tril_ref[...] = (cc < rr).astype(jnp.float32)
        carry_ref[...] = jnp.zeros_like(carry_ref)
        acc_ref[...] = jnp.zeros_like(acc_ref)

    carry = carry_ref[...]                                       # (1,1) running cum hazard
    row0 = i * blk
    for k in range(k_sub):                                       # statically unrolled
        r0 = k * t_sub
        y = y_ref[r0:r0 + t_sub, :]                              # (t_sub, 128) f32
        e = e_ref[r0:r0 + t_sub, :].astype(jnp.float32)          # int8/f32 -> f32 in-kernel

        # Mask rows past the end of the (rows, 128) array (ragged boundary block).
        g_row = row0 + r0 + lax.broadcasted_iota(jnp.int32, (t_sub, 1), 0)
        valid = g_row < rows
        y = jnp.where(valid, y, _NEG_FILL)
        e = jnp.where(valid, e, 0.0)

        ph = jnp.exp(y)                                          # EUP
        # Inclusive prefix along lanes: (t_sub,128) @ (128,128) on the MXU.
        cum_within = jnp.dot(ph, triu_ref[...],
                             preferred_element_type=jnp.float32)
        # Per-row totals = last lane of the inclusive prefix (no XLU reduce).
        row_tot = cum_within[:, _LANES - 1:_LANES]               # (t_sub, 1)
        # Exclusive prefix of row totals across rows of this sub-tile.
        row_prefix = jnp.dot(tril_ref[...], row_tot,
                             preferred_element_type=jnp.float32) # (t_sub, 1)
        cum = cum_within + row_prefix + carry
        # Vector loss accumulator (reduced once at the last grid step).
        acc_ref[...] += (y - jnp.log(cum)) * e
        # New carry = last element of the inclusive cumulative sum.
        carry = cum[t_sub - 1:t_sub, _LANES - 1:_LANES]          # (1,1)

    carry_ref[...] = carry

    @pl.when(i == pl.num_programs(0) - 1)
    def _finalize():
        out_ref[0, 0] = -jnp.sum(acc_ref[...])


def _total_loss_lane_dense(y_flat, e_flat, *, block_rows, t_sub):
    n = y_flat.shape[0]
    assert n >= 1
    rows = max(-(-n // _LANES), 32)          # >= 32 rows so blocks satisfy int8 (32,128) tiling
    n_pad = rows * _LANES
    if n_pad != n:                            # <= 127 elems (<= 4095 only for tiny inputs)
        y_flat = jnp.pad(y_flat, (0, n_pad - n), constant_values=_NEG_FILL)
        e_flat = jnp.pad(e_flat, (0, n_pad - n), constant_values=0)
    y2 = y_flat.reshape(rows, _LANES)         # free for a contiguous 1-D array
    e2 = e_flat.reshape(rows, _LANES)

    # Tile geometry: blk rows per grid step, an exact number of t_sub sub-tiles each.
    t_sub = max(32, _round_down(int(t_sub), 32))
    block_rows = max(32, _round_down(int(block_rows), 32))
    blk = min(block_rows, _round_down(rows, 32))
    t_sub = min(t_sub, blk)
    blk = _round_down(blk, t_sub)
    grid = (pl.cdiv(rows, blk),)

    kernel = functools.partial(_lane_dense_kernel, rows=rows, t_sub=t_sub)
    e_bytes = jnp.dtype(e2.dtype).itemsize
    cost = pl.CostEstimate(
        flops=int(2 * rows * _LANES * _LANES + 2 * rows * t_sub),
        transcendentals=int(2 * rows * _LANES),
        bytes_accessed=int(rows * _LANES * (4 + e_bytes) + 4),
    )

    out = pl.pallas_call(
        kernel,
        out_shape=jax.ShapeDtypeStruct((1, 1), jnp.float32),
        grid=grid,
        in_specs=[
            pl.BlockSpec((blk, _LANES), lambda i: (i, 0)),
            pl.BlockSpec((blk, _LANES), lambda i: (i, 0)),
        ],
        out_specs=pl.BlockSpec(memory_space=pltpu.MemorySpace.SMEM),
        scratch_shapes=[
            pltpu.VMEM((_LANES, _LANES), jnp.float32),   # lane-prefix operator (built once)
            pltpu.VMEM((t_sub, t_sub), jnp.float32),     # strict-lower row-prefix operator
            pltpu.VMEM((1, 1), jnp.float32),             # running cumsum carry
            pltpu.VMEM((t_sub, _LANES), jnp.float32),    # vector loss accumulator
        ],
        compiler_params=pltpu.CompilerParams(
            dimension_semantics=("arbitrary",),          # sequential carry chain
        ),
        cost_estimate=cost,
    )(y2, e2)
    return out[0, 0]


# --------------------------- general (N, D) kernel -----------------------------

def _columns_kernel(y_ref, e_ref, out_ref, tril_ref, carry_ref, acc_ref, *, n_rows):
    i = pl.program_id(0)
    blk = y_ref.shape[0]

    @pl.when(i == 0)
    def _init():
        rr = lax.broadcasted_iota(jnp.int32, (blk, blk), 0)
        cc = lax.broadcasted_iota(jnp.int32, (blk, blk), 1)
        tril_ref[...] = (cc <= rr).astype(jnp.float32)           # inclusive lower-triangular
        carry_ref[...] = jnp.zeros_like(carry_ref)
        acc_ref[...] = jnp.zeros_like(acc_ref)

    g_row = i * blk + lax.broadcasted_iota(jnp.int32, (blk, 1), 0)
    valid = g_row < n_rows
    y = jnp.where(valid, y_ref[...], _NEG_FILL)
    e = jnp.where(valid, e_ref[...].astype(jnp.float32), 0.0)

    ph = jnp.exp(y)
    cum = jnp.dot(tril_ref[...], ph,
                  preferred_element_type=jnp.float32) + carry_ref[...]
    acc_ref[...] += (y - jnp.log(cum)) * e
    carry_ref[...] = cum[blk - 1:blk, :]                          # last row = carry + block total

    @pl.when(i == pl.num_programs(0) - 1)
    def _finalize():
        out_ref[0, 0] = -jnp.sum(acc_ref[...])


def _total_loss_columns(y2, e2, *, block_rows):
    n, d = y2.shape
    assert n >= 1
    n_arr = max(n, 32)
    if n_arr != n:                                                # tiny inputs only
        y2 = jnp.pad(y2, ((0, n_arr - n), (0, 0)), constant_values=_NEG_FILL)
        e2 = jnp.pad(e2, ((0, n_arr - n), (0, 0)), constant_values=0)

    blk = min(max(32, _round_down(int(block_rows), 32)), _round_down(n_arr, 32))
    grid = (pl.cdiv(n_arr, blk),)
    kernel = functools.partial(_columns_kernel, n_rows=n_arr)

    out = pl.pallas_call(
        kernel,
        out_shape=jax.ShapeDtypeStruct((1, 1), jnp.float32),
        grid=grid,
        in_specs=[
            pl.BlockSpec((blk, d), lambda i: (i, 0)),
            pl.BlockSpec((blk, d), lambda i: (i, 0)),
        ],
        out_specs=pl.BlockSpec(memory_space=pltpu.MemorySpace.SMEM),
        scratch_shapes=[
            pltpu.VMEM((blk, blk), jnp.float32),   # inclusive-tril operator (built once)
            pltpu.VMEM((1, d), jnp.float32),       # per-column cumsum carry
            pltpu.VMEM((blk, d), jnp.float32),     # vector loss accumulator
        ],
        compiler_params=pltpu.CompilerParams(
            dimension_semantics=("arbitrary",),
        ),
    )(y2, e2)
    return out[0, 0]


# --------------------------------- wrappers ------------------------------------

def total_loss(y_pred, event, *, block_rows=2048, t_sub=256):
    """Pallas implementation of Total_Loss.forward. Returns a float32 scalar."""
    y = jnp.asarray(y_pred, jnp.float32)
    e = jnp.asarray(event)
    assert y.shape == e.shape, (y.shape, e.shape)

    # Keep `event` narrow: bool -> int8 (1 B/elem HBM traffic); cast to f32 in-kernel.
    if e.dtype == jnp.bool_:
        e = e.astype(jnp.int8)
    elif jnp.issubdtype(e.dtype, jnp.integer) and e.dtype != jnp.int8:
        e = e.astype(jnp.int32)
    elif jnp.issubdtype(e.dtype, jnp.floating) and e.dtype != jnp.float32:
        e = e.astype(jnp.float32)

    if y.ndim <= 1 or math.prod(y.shape[1:]) == 1:
        # Real survival-model case: a single risk-score column -> lane-dense layout.
        return _total_loss_lane_dense(y.reshape(-1), e.reshape(-1),
                                      block_rows=block_rows, t_sub=t_sub)
    # General case: independent cumsum per trailing column.
    # TODO(synk): pack small-D column streams into lanes (block-diagonal prefix
    # operator) instead of streaming (blk, D) blocks; low priority.
    n = y.shape[0]
    return _total_loss_columns(y.reshape(n, -1), e.reshape(n, -1),
                               block_rows=min(block_rows, 256))


def total_loss_ref(y_pred, event):
    """Pure-JAX reference matching the PyTorch module exactly."""
    y = jnp.asarray(y_pred, jnp.float32)
    e = jnp.asarray(event, jnp.float32)
    ph = jnp.exp(y)
    log_cum = jnp.log(jnp.cumsum(ph, axis=0))
    return -jnp.sum((y - log_cum) * e)


if __name__ == "__main__":
    key = jax.random.PRNGKey(0)
    k1, k2, k3, k4, k5, k6, k7, k8 = jax.random.split(key, 8)

    # 1) Survival-model shape (N, 1), bool event, default tiling.
    #    rows=40 -> blk=32 -> 2 grid steps with a ragged (masked) boundary block.
    n1 = 5000
    y1 = jax.random.normal(k1, (n1, 1), dtype=jnp.float32)
    e1 = jax.random.bernoulli(k2, p=0.5, shape=(n1, 1))
    ref1 = jax.block_until_ready(total_loss_ref(y1, e1))
    got1 = jax.block_until_ready(total_loss(y1, e1))
    assert jnp.allclose(got1, ref1, rtol=5e-4, atol=1e-2), (got1, ref1)

    # 2) 1-D, 128-aligned length (skip-pad path), f32 event.
    n2 = 8192
    y2 = jax.random.normal(k3, (n2,), dtype=jnp.float32)
    e2 = jax.random.bernoulli(k4, p=0.3, shape=(n2,)).astype(jnp.float32)
    ref2 = jax.block_until_ready(total_loss_ref(y2, e2))
    got2a = jax.block_until_ready(total_loss(y2, e2, block_rows=64, t_sub=32))  # 1 step, 2 sub-tiles
    got2b = jax.block_until_ready(total_loss(y2, e2, block_rows=32, t_sub=32))  # 2-step carry chain
    assert jnp.allclose(got2a, ref2, rtol=5e-4, atol=1e-2), (got2a, ref2)
    assert jnp.allclose(got2b, ref2, rtol=5e-4, atol=1e-2), (got2b, ref2)

    # 3) Tiny input (N < 128) exercises the small-input pad path.
    n3 = 100
    y3 = jax.random.normal(k5, (n3, 1), dtype=jnp.float32)
    e3 = jax.random.bernoulli(k6, p=0.5, shape=(n3, 1))
    ref3 = jax.block_until_ready(total_loss_ref(y3, e3))
    got3 = jax.block_until_ready(total_loss(y3, e3))
    assert jnp.allclose(got3, ref3, rtol=5e-4, atol=1e-2), (got3, ref3)

    # 4) General (N, D) path, multi-step grid with ragged boundary block.
    y4 = jax.random.normal(k7, (48, 4), dtype=jnp.float32)
    e4 = jax.random.bernoulli(k8, p=0.5, shape=(48, 4))
    ref4 = jax.block_until_ready(total_loss_ref(y4, e4))
    got4 = jax.block_until_ready(total_loss(y4, e4, block_rows=32))
    assert jnp.allclose(got4, ref4, rtol=5e-4, atol=1e-2), (got4, ref4)

    print("KERNEL_OK")
</pallas_src>

<mosaic_0001>
module attributes {stable_mosaic.version = 11 : i64} {
  func.func @_lane_dense_kernel(%arg0: i32, %arg1: memref<32x128xf32, #tpu.memory_space<vmem>>, %arg2: memref<32x128xi8, #tpu.memory_space<vmem>>, %arg3: memref<1x1xf32, #tpu.memory_space<smem>>, %arg4: memref<128x128xf32, #tpu.memory_space<vmem>>, %arg5: memref<32x32xf32, #tpu.memory_space<vmem>>, %arg6: memref<1x1xf32, #tpu.memory_space<vmem>>, %arg7: memref<32x128xf32, #tpu.memory_space<vmem>>) attributes {dimension_semantics = [#tpu.dimension_semantics<arbitrary>], iteration_bounds = array<i64: 2>, scalar_prefetch = 0 : i64, scratch_operands = 4 : i64, tpu.core_type = #tpu.core_type<tc>, window_params = [{transform_indices = @transform_0, window_bounds = array<i64: 32, 128>}, {transform_indices = @transform_1, window_bounds = array<i64: 32, 128>}, {transform_indices = @transform_2, window_bounds = array<i64: 1, 1>}]} {
    %c0_i32 = arith.constant 0 : i32
    %0 = arith.cmpi eq, %arg0, %c0_i32 : i32
    %1 = arith.extui %0 : i1 to i32
    %c0_i32_0 = arith.constant 0 : i32
    %2 = arith.cmpi ne, %1, %c0_i32_0 : i32
    scf.if %2 {
      %43 = tpu.iota {dimensions = array<i32: 0>} : vector<128x128xi32>
      %44 = tpu.iota {dimensions = array<i32: 1>} : vector<128x128xi32>
      %45 = arith.cmpi sle, %43, %44 : vector<128x128xi32>
      %46 = arith.extui %45 : vector<128x128xi1> to vector<128x128xi32>
      %47 = arith.sitofp %46 : vector<128x128xi32> to vector<128x128xf32>
      %c0_21 = arith.constant 0 : index
      %c0_22 = arith.constant 0 : index
      %48 = vector.load %arg4[%c0_21, %c0_22] : memref<128x128xf32, #tpu.memory_space<vmem>>, vector<128x128xf32>
      tpu.vector_store %arg4[%c0_21, %c0_22], %47 {strides = array<i32>} : memref<128x128xf32, #tpu.memory_space<vmem>>, vector<128x128xf32>,
      %49 = tpu.iota {dimensions = array<i32: 0>} : vector<32x32xi32>
      %50 = tpu.iota {dimensions = array<i32: 1>} : vector<32x32xi32>
      %51 = arith.cmpi slt, %50, %49 : vector<32x32xi32>
      %52 = arith.extui %51 : vector<32x32xi1> to vector<32x32xi32>
      %53 = arith.sitofp %52 : vector<32x32xi32> to vector<32x32xf32>
      %c0_23 = arith.constant 0 : index
      %c0_24 = arith.constant 0 : index
      %54 = vector.load %arg5[%c0_23, %c0_24] : memref<32x32xf32, #tpu.memory_space<vmem>>, vector<32x32xf32>
      tpu.vector_store %arg5[%c0_23, %c0_24], %53 {strides = array<i32>} : memref<32x32xf32, #tpu.memory_space<vmem>>, vector<32x32xf32>,
      %cst_25 = arith.constant 0.000000e+00 : f32
      %55 = vector.broadcast %cst_25 : f32 to vector<1x1xf32>
      %c0_26 = arith.constant 0 : index
      %c0_27 = arith.constant 0 : index
      %56 = vector.load %arg6[%c0_26, %c0_27] : memref<1x1xf32, #tpu.memory_space<vmem>>, vector<1x1xf32>
      tpu.vector_store %arg6[%c0_26, %c0_27], %55 {strides = array<i32>} : memref<1x1xf32, #tpu.memory_space<vmem>>, vector<1x1xf32>,
      %cst_28 = arith.constant 0.000000e+00 : f32
      %57 = vector.broadcast %cst_28 : f32 to vector<32x128xf32>
      %c0_29 = arith.constant 0 : index
      %c0_30 = arith.constant 0 : index
      %58 = vector.load %arg7[%c0_29, %c0_30] : memref<32x128xf32, #tpu.memory_space<vmem>>, vector<32x128xf32>
      tpu.vector_store %arg7[%c0_29, %c0_30], %57 {strides = array<i32>} : memref<32x128xf32, #tpu.memory_space<vmem>>, vector<32x128xf32>,
    } else {
    }
    %c0 = arith.constant 0 : index
    %c0_1 = arith.constant 0 : index
    %3 = vector.load %arg6[%c0, %c0_1] : memref<1x1xf32, #tpu.memory_space<vmem>>, vector<1x1xf32>
    %c32_i32 = arith.constant 32 : i32
    %4 = arith.muli %arg0, %c32_i32 : i32
    %c0_2 = arith.constant 0 : index
    %c0_3 = arith.constant 0 : index
    %5 = vector.load %arg1[%c0_2, %c0_3] : memref<32x128xf32, #tpu.memory_space<vmem>>, vector<32x128xf32>
    %c0_4 = arith.constant 0 : index
    %c0_5 = arith.constant 0 : index
    %6 = vector.load %arg2[%c0_4, %c0_5] : memref<32x128xi8, #tpu.memory_space<vmem>>, vector<32x128xi8>
    %7 = arith.sitofp %6 : vector<32x128xi8> to vector<32x128xf32>
    %c0_i32_6 = arith.constant 0 : i32
    %8 = arith.addi %4, %c0_i32_6 : i32
    %9 = tpu.iota {dimensions = array<i32: 0>} : vector<32x1xi32>
    %10 = vector.broadcast %8 : i32 to vector<32x1xi32>
    %11 = arith.addi %10, %9 : vector<32x1xi32>
    %c40_i32 = arith.constant 40 : i32
    %12 = vector.broadcast %c40_i32 : i32 to vector<32x1xi32>
    %13 = arith.cmpi slt, %11, %12 : vector<32x1xi32>
    %cst = arith.constant -1.000000e+30 : f32
    %14 = vector.shape_cast %13 : vector<32x1xi1> to vector<32x1xi1>
    %15 = vector.broadcast %14 : vector<32x1xi1> to vector<32x128xi1>
    %16 = vector.broadcast %cst : f32 to vector<32x128xf32>
    %17 = arith.select %15, %5, %16 : vector<32x128xi1>, vector<32x128xf32>
    %cst_7 = arith.constant 0.000000e+00 : f32
    %18 = vector.shape_cast %13 : vector<32x1xi1> to vector<32x1xi1>
    %19 = vector.broadcast %18 : vector<32x1xi1> to vector<32x128xi1>
    %20 = vector.broadcast %cst_7 : f32 to vector<32x128xf32>
    %21 = arith.select %19, %7, %20 : vector<32x128xi1>, vector<32x128xf32>
    %22 = math.exp %17 : vector<32x128xf32>
    %c0_8 = arith.constant 0 : index
    %c0_9 = arith.constant 0 : index
    %23 = vector.load %arg4[%c0_8, %c0_9] : memref<128x128xf32, #tpu.memory_space<vmem>>, vector<128x128xf32>
    %cst_10 = arith.constant dense<0.000000e+00> : vector<32x128xf32>
    %24 = tpu.matmul %22, %23, %cst_10 {dimension_numbers = #tpu.dot_dimension_numbers<[1], [0], [0], [1], [0, 0, 1, 1], [], []>} : vector<32x128xf32>, vector<128x128xf32>, vector<32x128xf32> -> vector<32x128xf32>
    %25 = vector.extract_strided_slice %24 {offsets = [0, 127], sizes = [32, 1], strides = [1, 1]} : vector<32x128xf32> to vector<32x1xf32>
    %c0_11 = arith.constant 0 : index
    %c0_12 = arith.constant 0 : index
    %26 = vector.load %arg5[%c0_11, %c0_12] : memref<32x32xf32, #tpu.memory_space<vmem>>, vector<32x32xf32>
    %cst_13 = arith.constant dense<0.000000e+00> : vector<32x1xf32>
    %27 = tpu.matmul %26, %25, %cst_13 {dimension_numbers = #tpu.dot_dimension_numbers<[1], [0], [0], [1], [0, 0, 1, 1], [], []>} : vector<32x32xf32>, vector<32x1xf32>, vector<32x1xf32> -> vector<32x1xf32>
    %28 = vector.broadcast %27 : vector<32x1xf32> to vector<32x128xf32>
    %29 = arith.addf %24, %28 : vector<32x128xf32>
    %30 = vector.broadcast %3 : vector<1x1xf32> to vector<32x128xf32>
    %31 = arith.addf %29, %30 : vector<32x128xf32>
    %c0_14 = arith.constant 0 : index
    %c0_15 = arith.constant 0 : index
    %32 = vector.load %arg7[%c0_14, %c0_15] : memref<32x128xf32, #tpu.memory_space<vmem>>, vector<32x128xf32>
    %33 = math.log %31 : vector<32x128xf32>
    %34 = arith.subf %17, %33 : vector<32x128xf32>
    %35 = arith.mulf %34, %21 : vector<32x128xf32>
    %36 = arith.addf %32, %35 : vector<32x128xf32>
    %c0_16 = arith.constant 0 : index
    %c0_17 = arith.constant 0 : index
    %37 = vector.load %arg7[%c0_16, %c0_17] : memref<32x128xf32, #tpu.memory_space<vmem>>, vector<32x128xf32>
    tpu.vector_store %arg7[%c0_16, %c0_17], %36 {strides = array<i32>} : memref<32x128xf32, #tpu.memory_space<vmem>>, vector<32x128xf32>,
    %38 = vector.extract_strided_slice %31 {offsets = [31, 127], sizes = [1, 1], strides = [1, 1]} : vector<32x128xf32> to vector<1x1xf32>
    %c0_18 = arith.constant 0 : index
    %c0_19 = arith.constant 0 : index
    %39 = vector.load %arg6[%c0_18, %c0_19] : memref<1x1xf32, #tpu.memory_space<vmem>>, vector<1x1xf32>
    tpu.vector_store %arg6[%c0_18, %c0_19], %38 {strides = array<i32>} : memref<1x1xf32, #tpu.memory_space<vmem>>, vector<1x1xf32>,
    %c1_i32 = arith.constant 1 : i32
    %40 = arith.cmpi eq, %arg0, %c1_i32 : i32
    %41 = arith.extui %40 : i1 to i32
    %c0_i32_20 = arith.constant 0 : i32
    %42 = arith.cmpi ne, %41, %c0_i32_20 : i32
    scf.if %42 {
      %c0_21 = arith.constant 0 : index
      %c0_22 = arith.constant 0 : index
      %43 = vector.load %arg7[%c0_21, %c0_22] : memref<32x128xf32, #tpu.memory_space<vmem>>, vector<32x128xf32>
      %44 = vector.shape_cast %43 : vector<32x128xf32> to vector<1x32x128xf32>
      %cst_23 = arith.constant dense<0.000000e+00> : vector<1xf32>
      %45 = vector.multi_reduction <add>, %44, %cst_23 [1, 2] : vector<1x32x128xf32> to vector<1xf32>
      %46 = vector.shape_cast %45 : vector<1xf32> to vector<1x1x1xf32>
      %47 = vector.extract %46[0, 0, 0] : f32 from vector<1x1x1xf32>
      %cst_24 = arith.constant 0.000000e+00 : f32
      %48 = arith.subf %cst_24, %47 : f32
      %c0_25 = arith.constant 0 : index
      %c0_26 = arith.constant 0 : index
      %49 = memref.load %arg3[%c0_25, %c0_26] : memref<1x1xf32, #tpu.memory_space<smem>>
      memref.store %48, %arg3[%c0_25, %c0_26] : memref<1x1xf32, #tpu.memory_space<smem>>
    } else {
    }
    return
  }
  func.func @transform_0(%arg0: i32) -> (i32, i32) {
    %c0_i32 = arith.constant 0 : i32
    %c0_i32_0 = arith.constant 0 : i32
    return %arg0, %c0_i32 : i32, i32
  }
  func.func @transform_1(%arg0: i32) -> (i32, i32) {
    %c0_i32 = arith.constant 0 : i32
    %c0_i32_0 = arith.constant 0 : i32
    return %arg0, %c0_i32 : i32, i32
  }
  func.func @transform_2(%arg0: i32) -> (i32, i32) {
    %c0_i32 = arith.constant 0 : i32
    %c0_i32_0 = arith.constant 0 : i32
    %c0_i32_1 = arith.constant 0 : i32
    return %c0_i32, %c0_i32_0 : i32, i32
  }
}

</mosaic_0001>

<llo_original>
// kernel: tpu_custom_call.1
$region0: #{tpu_custom_call.1}
  #allocation0 [shape = 'u32[]', space=smem, size = 0x4, offset = 0x4, fixed_abs, tag = 'smem constant byte address 0x4 - core index']
  #allocation1 [shape = 'u32[144,128]{1,0:T(1,128)}', space=vmem, size = 0x12000, scoped, tag = 'internal scratch']
  #allocation2 [shape = 'f32[128,128]{1,0:T(8,128)}', space=vmem, size = 0x10000, scoped, tag = 'scratch operand']
  #allocation3 [shape = 'f32[32,32]{1,0:T(8,128)}', space=vmem, size = 0x4000, scoped, tag = 'scratch operand']
  #allocation4 [shape = 'f32[1,1]{1,0:T(1,128)}', space=vmem, size = 0x200, scoped, tag = 'scratch operand']
  #allocation5 [shape = 'f32[32,128]{1,0:T(8,128)}', space=vmem, size = 0x4000, scoped, tag = 'scratch operand']
  %s0 = inlined_call_operand.hbm [shape: f32[40,128], index: 0, kind: input, shape index: {}]
  %s1 = inlined_call_operand.hbm [shape: s8[40,128], index: 1, kind: input, shape index: {}]
  %s2 = inlined_call_operand.hbm [shape: f32[1,1], index: 2, kind: output, shape index: {}]
  %s3 = sld [smem:[#allocation0]]
  $region57: #{tpu_custom_call.1} parent=0
    _
  %s5 = ssub.s32 1, %s3
  %s6 = scalar_select 0, %s5, %s3
  $region1: #{tpu_custom_call.1} parent=0
    #allocation6 [shape = 'u8[32768]{0}', space=vmem, size = 0x8000, scoped, tag = 'input window, operand 0']
    #allocation7 [shape = 's32[2]{0}', space=sflag, size = 0x8, scoped, tag = 'scoped memory for tpu_custom_call.1']
    #allocation8 [shape = 's32[2]{0}', space=sflag, size = 0x8, scoped, tag = 'scoped memory for tpu_custom_call.1']
    #allocation9 [shape = 'u8[8192]{0}', space=vmem, size = 0x2000, scoped, tag = 'input window, operand 1']
    #allocation10 [shape = 's32[2]{0}', space=sflag, size = 0x8, scoped, tag = 'scoped memory for tpu_custom_call.1']
    #allocation11 [shape = 'u8[512]{0}', space=smem, size = 0x200, scoped, tag = 'output window, operand 0, single buffered']
    %7 = vsyncpa [#allocation7], 0
    %s8 = scalar_lea.sflag [#allocation7], 1
    %9 = vsyncpa %s8, 0
    %10 = vsyncpa [#allocation10], 0
    %s11 = scalar_lea.sflag [#allocation10], 1
    %12 = vsyncpa %s11, 0
    %13 = vsyncpa [#allocation8], 0
    loop: start=0, step=1, limit=4
    $region2: #{tpu_custom_call.1} parent=1 // loop_pre_header
      _
    $region3: #{tpu_custom_call.1} parent=1 // loop_header
      %s15 = sphi 0, %s19
      %p16 = scmp.ge.s32.totalorder %s15, 4
      %s25 = sphi 0, %s27
      %s28 = sphi 0, %s25
      %s29 = sphi 0, %s28
      %s45 = sphi 0, %s29
      %s51 = sphi 0, %s53
      %s54 = sphi 0, %s51
      %s55 = sphi 0, %s54
      %s71 = sphi 0, %s55
      %s75 = sphi 0, %s75
      %s77 = sphi 0, %s75
      %s78 = sphi 0, %s77
      %s92 = sphi 0, %s78
    $region4: #{tpu_custom_call.1} parent=1 // loop_header_branch
      %18 = sbr.rel (%p16) target = $region8
    $region5: #{tpu_custom_call.1} parent=1 // loop_body
      %s20 = ssub.s32 %s15, 1
      %s21 = ssub.s32 %s15, 2
      %s22 = sadd.s32 %s15, 1
      %s23 = ssub.s32 %s15, %s22
      %p24 = scmp.eq.s32.totalorder %s23, 0
      %s26 = sadd.s32 %s25, 1
      %s27 = scalar_select %p24, %s25, %s26
      %p30 = pneg %p24
      %p31 = scmp.eq.s32.totalorder %s15, 1
      %p32 = por %p30, %p31
      %p33 = scmp.ne.s32.totalorder %s25, %s28
      %p34 = scmp.eq.s32.totalorder %s15, 0
      %p35 = por %p33, %p34
      %p36 = scmp.ne.s32.totalorder %s25, %s28
      %p37 = scmp.eq.s32.totalorder %s20, 1
      %p38 = por %p36, %p37
      %p39 = scmp.ne.s32.totalorder %s28, %s29
      %p40 = scmp.eq.s32.totalorder %s20, 0
      %p41 = por %p39, %p40
      %p42 = scmp.ne.s32.totalorder %s28, %s29
      %p43 = scmp.eq.s32.totalorder %s21, 1
      %p44 = por %p42, %p43
      %p46 = scmp.ne.s32.totalorder %s29, %s45
      %p47 = scmp.eq.s32.totalorder %s21, 0
      %p48 = por %p46, %p47
      %s49 = ssub.s32 %s15, %s22
      %p50 = scmp.eq.s32.totalorder %s49, 0
      %s52 = sadd.s32 %s51, 1
      %s53 = scalar_select %p50, %s51, %s52
      %p56 = pneg %p50
      %p57 = scmp.eq.s32.totalorder %s15, 1
      %p58 = por %p56, %p57
      %p59 = scmp.ne.s32.totalorder %s51, %s54
      %p60 = scmp.eq.s32.totalorder %s15, 0
      %p61 = por %p59, %p60
      %p62 = scmp.ne.s32.totalorder %s51, %s54
      %p63 = scmp.eq.s32.totalorder %s20, 1
      %p64 = por %p62, %p63
      %p65 = scmp.ne.s32.totalorder %s54, %s55
      %p66 = scmp.eq.s32.totalorder %s20, 0
      %p67 = por %p65, %p66
      %p68 = scmp.ne.s32.totalorder %s54, %s55
      %p69 = scmp.eq.s32.totalorder %s21, 1
      %p70 = por %p68, %p69
      %p72 = scmp.ne.s32.totalorder %s55, %s71
      %p73 = scmp.eq.s32.totalorder %s21, 0
      %p74 = por %p72, %p73
      %s76 = sadd.s32 %s75, 1
      %p79 = scmp.eq.s32.totalorder %s15, 1
      %p80 = scmp.ne.s32.totalorder %s75, %s77
      %p81 = scmp.eq.s32.totalorder %s15, 0
      %p82 = por %p80, %p81
      %p83 = scmp.ne.s32.totalorder %s75, %s77
      %p84 = scmp.eq.s32.totalorder %s20, 1
      %p85 = por %p83, %p84
      %p86 = scmp.ne.s32.totalorder %s77, %s78
      %p87 = scmp.eq.s32.totalorder %s20, 0
      %p88 = por %p86, %p87
      %p89 = scmp.ne.s32.totalorder %s77, %s78
      %p90 = scmp.eq.s32.totalorder %s21, 1
      %p91 = por %p89, %p90
      %p93 = scmp.ne.s32.totalorder %s78, %s92
      %p94 = scmp.eq.s32.totalorder %s21, 0
      %p95 = por %p93, %p94
      %p96 = scmp.le.s32.totalorder 1, %s15
      %p97 = scmp.lt.s32.totalorder %s15, 3
      %p98 = pnand %p96, %p97
      %p99 = pneg %p98
      // Predicated region
      $region9: #{tpu_custom_call.1} parent=5 // pred_check
        _
      $region10: #{tpu_custom_call.1} parent=5 // pred_check_branch
        %101 = sbr.rel (%p98) target = $region12
      $region11: #{tpu_custom_call.1} parent=5 // pred_region
        %s102 = ssub.s32 %s15, 1
      $region12: #{tpu_custom_call.1} parent=5 // pred_fallthru
        _
      %p103 = scmp.lt.s32.totalorder %s15, 2
      // Predicated region
      $region13: #{tpu_custom_call.1} parent=5 // pred_check
        %p104 = pneg %p103
      $region14: #{tpu_custom_call.1} parent=5 // pred_check_branch
        %106 = sbr.rel (%p104) target = $region16
      $region15: #{tpu_custom_call.1} parent=5 // pred_region
        // Predicated region
        $region17: #{tpu_custom_call.1} parent=15 // pred_check
          %p107 = pneg %p35
        $region18: #{tpu_custom_call.1} parent=15 // pred_check_branch
          %109 = sbr.rel (%p107) target = $region20
        $region19: #{tpu_custom_call.1} parent=15 // pred_region
          %s110 = sand.u32 %s25, 1
          %s111 = scalar_lea.sflag [#allocation7], %s110
          %s112 = sand.u32 %s25, 1
          %s113 = smul.addr %s112, 32
          %s114 = scalar_lea.vmem [#allocation6], %s113
          %s115 = smul.u32 4, %s15
          %s116 = ssub.s32 5, %s115
          %p117 = scmp.lt.s32.totalorder %s116, 4
          %s118 = scalar_select %p117, %s116, 4
          %s119 = smul.u32 128, %s118
          %s121 = ssub.s32 512, %s119
          %122 = vsyncadd %s111, %s121
          %p123 = scmp.ne.s32.totalorder 0, %s119
          %s124 = smul.addr %s115, 128
          %s125 = scalar_lea.hbm %s0, %s124
          %s126 = smul.u32 8, %s118
          %s127 = sshll.u32 %s114, 4
          %s128 = int_to_ptr.vmem [resolvable:$true] %s127
          %s129 = sshll.u32 %s126, 4
          %133 = dma.hbm_to_vmem [thread:$0]  (%p123), %s125, %s129, %s128, %s111, 128, 128, 8
        $region20: #{tpu_custom_call.1} parent=15 // pred_fallthru
          _
        // Predicated region
        $region21: #{tpu_custom_call.1} parent=15 // pred_check
          %p134 = pneg %p61
        $region22: #{tpu_custom_call.1} parent=15 // pred_check_branch
          %136 = sbr.rel (%p134) target = $region24
        $region23: #{tpu_custom_call.1} parent=15 // pred_region
          %s137 = sand.u32 %s51, 1
          %s138 = scalar_lea.sflag [#allocation10], %s137
          %s139 = sand.u32 %s51, 1
          %s140 = smul.addr %s139, 8
          %s141 = scalar_lea.vmem [#allocation9], %s140
          %s142 = smul.u32 4, %s15
          %s143 = ssub.s32 5, %s142
          %p144 = scmp.lt.s32.totalorder %s143, 4
          %s145 = scalar_select %p144, %s143, 4
          %s146 = smul.u32 32, %s145
          %s148 = ssub.s32 128, %s146
          %149 = vsyncadd %s138, %s148
          %p150 = scmp.ne.s32.totalorder 0, %s146
          %s151 = smul.addr %s142, 32
          %s152 = scalar_lea.hbm %s1, %s151
          %s153 = smul.u32 2, %s145
          %s154 = sshll.u32 %s141, 4
          %s155 = int_to_ptr.vmem [resolvable:$true] %s154
          %s156 = sshll.u32 %s153, 4
          %160 = dma.hbm_to_vmem [thread:$0]  (%p150), %s152, %s156, %s155, %s138, 32, 32, 2
        $region24: #{tpu_custom_call.1} parent=15 // pred_fallthru
          _
      $region16: #{tpu_custom_call.1} parent=5 // pred_fallthru
        _
      %p161 = scmp.le.s32.totalorder 1, %s15
      %p162 = scmp.lt.s32.totalorder %s15, 3
      %p163 = pnand %p161, %p162
      %p164 = pneg %p163
      // Predicated region
      $region25: #{tpu_custom_call.1} parent=5 // pred_check
        _
      $region26: #{tpu_custom_call.1} parent=5 // pred_check_branch
        %166 = sbr.rel (%p163) target = $region28
      $region27: #{tpu_custom_call.1} parent=5 // pred_region
        %s167 = ssub.s32 %s15, 1
        %s168 = sand.u32 %s28, 1
        %s169 = scalar_lea.sflag [#allocation7], %s168
        %s170 = sand.u32 %s28, 1
        %s171 = smul.addr %s170, 32
        %s172 = scalar_lea.vmem [#allocation6], %s171
        // Predicated region
        $region29: #{tpu_custom_call.1} parent=27 // pred_check
          %p173 = pneg %p41
        $region30: #{tpu_custom_call.1} parent=27 // pred_check_branch
          %175 = sbr.rel (%p173) target = $region32
        $region31: #{tpu_custom_call.1} parent=27 // pred_region
          %176 = dma.done %s169, 512
        $region32: #{tpu_custom_call.1} parent=27 // pred_fallthru
          _
        %s177 = sand.u32 %s54, 1
        %s178 = scalar_lea.sflag [#allocation10], %s177
        %s179 = sand.u32 %s54, 1
        %s180 = smul.addr %s179, 8
        %s181 = scalar_lea.vmem [#allocation9], %s180
        // Predicated region
        $region33: #{tpu_custom_call.1} parent=27 // pred_check
          %p182 = pneg %p67
        $region34: #{tpu_custom_call.1} parent=27 // pred_check_branch
          %184 = sbr.rel (%p182) target = $region36
        $region35: #{tpu_custom_call.1} parent=27 // pred_region
          %185 = dma.done %s178, 128
        $region36: #{tpu_custom_call.1} parent=27 // pred_fallthru
          _
        %s186 = sand.u32 %s28, 1
        %s187 = scalar_lea.sflag [#allocation7], %s186
        %s188 = sand.u32 %s28, 1
        %s189 = smul.addr %s188, 32
        %s190 = scalar_lea.vmem [#allocation6], %s189
        %p191 = pneg %p41
        %p192 = pneg %p38
        %s193 = sand.u32 %s54, 1
        %s194 = scalar_lea.sflag [#allocation10], %s193
        %s195 = sand.u32 %s54, 1
        %s196 = smul.addr %s195, 8
        %s197 = scalar_lea.vmem [#allocation9], %s196
        %p198 = pneg %p67
        %p199 = pneg %p64
        %p200 = pneg %p88
        %p201 = pneg %p85
        %s202 = smul.u32 4, %s20
        %s203 = ssub.s32 5, %s202
        %p204 = scmp.lt.s32.totalorder %s203, 4
        %s205 = scalar_select %p204, %s203, 4
        %s206 = smul.u32 128, %s205
        %s207 = smul.u32 4, %s20
        %s208 = ssub.s32 5, %s207
        %p209 = scmp.lt.s32.totalorder %s208, 4
        %s210 = scalar_select %p209, %s208, 4
        %s211 = smul.u32 32, %s210
        %p212 = scmp.eq.s32.totalorder %s20, 0
        // Predicated region
        $region37: #{tpu_custom_call.1} parent=27 // pred_check
          %p213 = pneg %p212
        $region38: #{tpu_custom_call.1} parent=27 // pred_check_branch
          %215 = sbr.rel (%p213) target = $region40
        $region39: #{tpu_custom_call.1} parent=27 // pred_region
          %v216 = vlaneseq
          %v217 = vshrl.u32 %v216, 7
          %v218 = vadd.s32 %v217, 8
          %v219 = vadd.s32 %v217, 16
          %v220 = vadd.s32 %v217, 24
          %v221 = vadd.s32 %v217, 32
          %v222 = vadd.s32 %v217, 40
          %v223 = vadd.s32 %v217, 48
          %v224 = vadd.s32 %v217, 56
          %v225 = vadd.s32 %v217, 64
          %v226 = vadd.s32 %v217, 72
          %v227 = vadd.s32 %v217, 80
          %v228 = vadd.s32 %v217, 88
          %v229 = vadd.s32 %v217, 96
          %v230 = vadd.s32 %v217, 104
          %v231 = vadd.s32 %v217, 112
          %v232 = vadd.s32 %v217, 120
          %v233 = vlaneseq
          %v234 = vand.u32 %v233, 127
          %vm235 = vcmp.le.s32.totalorder %v217, %v234
          %vm236 = vcmp.le.s32.totalorder %v218, %v234
          %vm237 = vcmp.le.s32.totalorder %v219, %v234
          %vm238 = vcmp.le.s32.totalorder %v220, %v234
          %vm239 = vcmp.le.s32.totalorder %v221, %v234
          %vm240 = vcmp.le.s32.totalorder %v222, %v234
          %vm241 = vcmp.le.s32.totalorder %v223, %v234
          %vm242 = vcmp.le.s32.totalorder %v224, %v234
          %vm243 = vcmp.le.s32.totalorder %v225, %v234
          %vm244 = vcmp.le.s32.totalorder %v226, %v234
          %vm245 = vcmp.le.s32.totalorder %v227, %v234
          %vm246 = vcmp.le.s32.totalorder %v228, %v234
          %vm247 = vcmp.le.s32.totalorder %v229, %v234
          %vm248 = vcmp.le.s32.totalorder %v230, %v234
          %vm249 = vcmp.le.s32.totalorder %v231, %v234
          %vm250 = vcmp.le.s32.totalorder %v232, %v234
          %v251 = vsel %vm235, 1, 0
          %v252 = vsel %vm236, 1, 0
          %v253 = vsel %vm237, 1, 0
          %v254 = vsel %vm238, 1, 0
          %v255 = vsel %vm239, 1, 0
          %v256 = vsel %vm240, 1, 0
          %v257 = vsel %vm241, 1, 0
          %v258 = vsel %vm242, 1, 0
          %v259 = vsel %vm243, 1, 0
          %v260 = vsel %vm244, 1, 0
          %v261 = vsel %vm245, 1, 0
          %v262 = vsel %vm246, 1, 0
          %v263 = vsel %vm247, 1, 0
          %v264 = vsel %vm248, 1, 0
          %v265 = vsel %vm249, 1, 0
          %v266 = vsel %vm250, 1, 0
          %v267 = vcvt.s32.f32 %v251
          %v268 = vcvt.s32.f32 %v252
          %v269 = vcvt.s32.f32 %v253
          %v270 = vcvt.s32.f32 %v254
          %v271 = vcvt.s32.f32 %v255
          %v272 = vcvt.s32.f32 %v256
          %v273 = vcvt.s32.f32 %v257
          %v274 = vcvt.s32.f32 %v258
          %v275 = vcvt.s32.f32 %v259
          %v276 = vcvt.s32.f32 %v260
          %v277 = vcvt.s32.f32 %v261
          %v278 = vcvt.s32.f32 %v262
          %v279 = vcvt.s32.f32 %v263
          %v280 = vcvt.s32.f32 %v264
          %v281 = vcvt.s32.f32 %v265
          %v282 = vcvt.s32.f32 %v266
          %283 = vst [vmem:[#allocation2] sm:$0xff] %v267
          %284 = vst [vmem:[#allocation2 + $0x8] sm:$0xff] %v268
          %285 = vst [vmem:[#allocation2 + $0x10] sm:$0xff] %v269
          %286 = vst [vmem:[#allocation2 + $0x18] sm:$0xff] %v270
          %287 = vst [vmem:[#allocation2 + $0x20] sm:$0xff] %v271
          %288 = vst [vmem:[#allocation2 + $0x28] sm:$0xff] %v272
          %289 = vst [vmem:[#allocation2 + $0x30] sm:$0xff] %v273
          %290 = vst [vmem:[#allocation2 + $0x38] sm:$0xff] %v274
          %291 = vst [vmem:[#allocation2 + $0x40] sm:$0xff] %v275
          %292 = vst [vmem:[#allocation2 + $0x48] sm:$0xff] %v276
          %293 = vst [vmem:[#allocation2 + $0x50] sm:$0xff] %v277
          %294 = vst [vmem:[#allocation2 + $0x58] sm:$0xff] %v278
          %295 = vst [vmem:[#allocation2 + $0x60] sm:$0xff] %v279
          %296 = vst [vmem:[#allocation2 + $0x68] sm:$0xff] %v280
          %297 = vst [vmem:[#allocation2 + $0x70] sm:$0xff] %v281
          %298 = vst [vmem:[#allocation2 + $0x78] sm:$0xff] %v282
          %vm299 = vcmp.lt.s32.totalorder %v234, %v217
          %vm300 = vcmp.lt.s32.totalorder %v234, %v218
          %vm301 = vcmp.lt.s32.totalorder %v234, %v219
          %vm302 = vcmp.lt.s32.totalorder %v234, %v220
          %v303 = vsel %vm299, 1, 0
          %v304 = vsel %vm300, 1, 0
          %v305 = vsel %vm301, 1, 0
          %v306 = vsel %vm302, 1, 0
          %v307 = vcvt.s32.f32 %v303
          %v308 = vcvt.s32.f32 %v304
          %v309 = vcvt.s32.f32 %v305
          %v310 = vcvt.s32.f32 %v306
          %vm311 = vcmask 261120
          %312 = vst.msk [vmem:[#allocation3] sm:$0xff] %vm311, %v307
          %313 = vst.msk [vmem:[#allocation3 + $0x8] sm:$0xff] %vm311, %v308
          %314 = vst.msk [vmem:[#allocation3 + $0x10] sm:$0xff] %vm311, %v309
          %315 = vst.msk [vmem:[#allocation3 + $0x18] sm:$0xff] %vm311, %v310
          %vm316 = vcmask 0
          %317 = vst.msk [vmem:[#allocation4] sm:$0x1] %vm316, 0.0
          %318 = vst [vmem:[#allocation5] sm:$0xff] 0.0
          %319 = vst [vmem:[#allocation5 + $0x8] sm:$0xff] 0.0
          %320 = vst [vmem:[#allocation5 + $0x10] sm:$0xff] 0.0
          %321 = vst [vmem:[#allocation5 + $0x18] sm:$0xff] 0.0
        $region40: #{tpu_custom_call.1} parent=27 // pred_fallthru
          _
        %v322 = vld [vmem:[#allocation4] sm:$0x1]
        %s323 = smul.u32 %s20, 32
        %v324 = vld [vmem:[%s172] sm:$0xff]
        %v325 = vld [vmem:[%s172 + $0x8] sm:$0xff]
        %v326 = vld [vmem:[%s172 + $0x10] sm:$0xff]
        %v327 = vld [vmem:[%s172 + $0x18] sm:$0xff]
        %v328 = vld [vmem:[%s181] sm:$0x3]
        %v329 = vld [vmem:[%s181 + $0x2] sm:$0x3]
        %v330 = vld [vmem:[%s181 + $0x4] sm:$0x3]
        %v331 = vld [vmem:[%s181 + $0x6] sm:$0x3]
        %v332 = vunpack.c.0.s8 %v328
        %v333 = vunpack.c.0.s8 %v329
        %v334 = vunpack.c.0.s8 %v330
        %v335 = vunpack.c.0.s8 %v331
        %v336 = vcvt.s32.f32 %v332
        %v337 = vcvt.s32.f32 %v333
        %v338 = vcvt.s32.f32 %v334
        %v339 = vcvt.s32.f32 %v335
        %v340 = vlaneseq
        %v341 = vshrl.u32 %v340, 7
        %v342 = vadd.s32 %v341, 8
        %v343 = vadd.s32 %v341, 16
        %v344 = vadd.s32 %v341, 24
        %v345 = vstv %s323
        %v346 = vadd.s32 %v345, %v341
        %v347 = vadd.s32 %v345, %v342
        %v348 = vadd.s32 %v345, %v343
        %v349 = vadd.s32 %v345, %v344
        %vm350 = vcmp.lt.s32.totalorder %v346, 40
        %vm351 = vcmp.lt.s32.totalorder %v347, 40
        %vm352 = vcmp.lt.s32.totalorder %v348, 40
        %vm353 = vcmp.lt.s32.totalorder %v349, 40
        %v354 = vsel %vm350, 1, 0
        %v355 = vsel %vm351, 1, 0
        %v356 = vsel %vm352, 1, 0
        %v357 = vsel %vm353, 1, 0
        %vm358 = vcmp.eq.s32.totalorder %v354, 1
        %vm359 = vcmp.eq.s32.totalorder %v355, 1
        %vm360 = vcmp.eq.s32.totalorder %v356, 1
        %vm361 = vcmp.eq.s32.totalorder %v357, 1
        %v362 = vsel %vm358, %v324, -1e+30
        %v363 = vsel %vm359, %v325, -1e+30
        %v364 = vsel %vm360, %v326, -1e+30
        %v365 = vsel %vm361, %v327, -1e+30
        %v366 = vsel %vm358, %v336, 0.0
        %v367 = vsel %vm359, %v337, 0.0
        %v368 = vsel %vm360, %v338, 0.0
        %v369 = vsel %vm361, %v339, 0.0
        %v370 = vmul.f32 %v362, 1.442695
        %v371 = vpow.pop %v370
        %v372 = vmul.f32 %v363, 1.442695
        %v373 = vpow.pop %v372
        %v374 = vmul.f32 %v364, 1.442695
        %v375 = vpow.pop %v374
        %v376 = vmul.f32 %v365, 1.442695
        %v377 = vpow.pop %v376
        %v378 = vld [vmem:[#allocation2] sm:$0xff]
        %v379 = vld [vmem:[#allocation2 + $0x8] sm:$0xff]
        %v380 = vld [vmem:[#allocation2 + $0x10] sm:$0xff]
        %v381 = vld [vmem:[#allocation2 + $0x18] sm:$0xff]
        %v382 = vld [vmem:[#allocation2 + $0x20] sm:$0xff]
        %v383 = vld [vmem:[#allocation2 + $0x28] sm:$0xff]
        %v384 = vld [vmem:[#allocation2 + $0x30] sm:$0xff]
        %v385 = vld [vmem:[#allocation2 + $0x38] sm:$0xff]
        %v386 = vld [vmem:[#allocation2 + $0x40] sm:$0xff]
        %v387 = vld [vmem:[#allocation2 + $0x48] sm:$0xff]
        %v388 = vld [vmem:[#allocation2 + $0x50] sm:$0xff]
        %v389 = vld [vmem:[#allocation2 + $0x58] sm:$0xff]
        %v390 = vld [vmem:[#allocation2 + $0x60] sm:$0xff]
        %v391 = vld [vmem:[#allocation2 + $0x68] sm:$0xff]
        %v392 = vld [vmem:[#allocation2 + $0x70] sm:$0xff]
        %v393 = vld [vmem:[#allocation2 + $0x78] sm:$0xff]
        %394 = vmatprep.subr.mxu0 0.0
        %395 = vmatpush1.msra.mxu0 %v378
        %396 = vmatprep.subr.mxu0 0.0
        %397 = vmatpush1.msra.mxu0 %v379
        %398 = vmatprep.subr.mxu0 0.0
        %399 = vmatpush1.msra.mxu0 %v380
        %400 = vmatprep.subr.mxu0 0.0
        %401 = vmatpush1.msra.mxu0 %v381
        %402 = vmatprep.subr.mxu0 0.0
        %403 = vmatpush1.msra.mxu0 %v382
        %404 = vmatprep.subr.mxu0 0.0
        %405 = vmatpush1.msra.mxu0 %v383
        %406 = vmatprep.subr.mxu0 0.0
        %407 = vmatpush1.msra.mxu0 %v384
        %408 = vmatprep.subr.mxu0 0.0
        %409 = vmatpush1.msra.mxu0 %v385
        %410 = vmatprep.subr.mxu0 0.0
        %411 = vmatpush1.msra.mxu0 %v386
        %412 = vmatprep.subr.mxu0 0.0
        %413 = vmatpush1.msra.mxu0 %v387
        %414 = vmatprep.subr.mxu0 0.0
        %415 = vmatpush1.msra.mxu0 %v388
        %416 = vmatprep.subr.mxu0 0.0
        %417 = vmatpush1.msra.mxu0 %v389
        %418 = vmatprep.subr.mxu0 0.0
        %419 = vmatpush1.msra.mxu0 %v390
        %420 = vmatprep.subr.mxu0 0.0
        %421 = vmatpush1.msra.mxu0 %v391
        %422 = vmatprep.subr.mxu0 0.0
        %423 = vmatpush1.msra.mxu0 %v392
        %424 = vmatprep.subr.mxu0 0.0
        %425 = vmatpush1.msra.mxu0 %v393
        %426 = vmatprep.subr.mxu0 0.0
        %427 = vmatpush1.msra.mxu0 0.0
        %428 = vmatprep.subr.mxu0 0.0
        %429 = vmatpush1.msra.mxu0 0.0
        %430 = vmatprep.subr.mxu0 0.0
        %431 = vmatpush1.msra.mxu0 0.0
        %432 = vmatprep.subr.mxu0 0.0
        %433 = vmatpush1.msra.mxu0 0.0
        %434 = vmatprep.subr.mxu0 0.0
        %435 = vmatpush1.msra.mxu0 0.0
        %436 = vmatprep.subr.mxu0 0.0
        %437 = vmatpush1.msra.mxu0 0.0
        %438 = vmatprep.subr.mxu0 0.0
        %439 = vmatpush1.msra.mxu0 0.0
        %440 = vmatprep.subr.mxu0 0.0
        %441 = vmatpush1.msra.mxu0 0.0
        %442 = vmatprep.subr.mxu0 0.0
        %443 = vmatpush1.msra.mxu0 0.0
        %444 = vmatprep.subr.mxu0 0.0
        %445 = vmatpush1.msra.mxu0 0.0
        %446 = vmatprep.subr.mxu0 0.0
        %447 = vmatpush1.msra.mxu0 0.0
        %448 = vmatprep.subr.mxu0 0.0
        %449 = vmatpush1.msra.mxu0 0.0
        %450 = vmatprep.subr.mxu0 0.0
        %451 = vmatpush1.msra.mxu0 0.0
        %452 = vmatprep.subr.mxu0 0.0
        %453 = vmatpush1.msra.mxu0 0.0
        %454 = vmatprep.subr.mxu0 0.0
        %455 = vmatpush1.msra.mxu0 0.0
        %456 = vmatprep.subr.mxu0 0.0
        %457 = vmatpush1.msra.mxu0 0.0
        %458 = vmatprep.mubr.f32.mxu0 0.0
        %459 = vmatmul.mubr.f32.gmra.mrb[0].mxu0 %v371
        %v460 = vpop.f32.mrb[0].mxu0
        %v461 = vadd.f32 0.0, %v460
        %v462 = vpop.f32.mrb[0].mxu0
        %463 = vmatprep.mubr.f32.mxu0 0.0
        %464 = vmatmul.mubr.f32.gmra.mrb[0].mxu0 %v373
        %v465 = vpop.f32.mrb[0].mxu0
        %v466 = vadd.f32 0.0, %v465
        %v467 = vpop.f32.mrb[0].mxu0
        %468 = vmatprep.mubr.f32.mxu0 0.0
        %469 = vmatmul.mubr.f32.gmra.mrb[0].mxu0 %v375
        %v470 = vpop.f32.mrb[0].mxu0
        %v471 = vadd.f32 0.0, %v470
        %v472 = vpop.f32.mrb[0].mxu0
        %473 = vmatprep.mubr.f32.mxu0 0.0
        %474 = vmatmul.mubr.f32.gmra.mrb[0].mxu0 %v377
        %v475 = vpop.f32.mrb[0].mxu0
        %v476 = vadd.f32 0.0, %v475
        %v477 = vpop.f32.mrb[0].mxu0
        %478 = vdwg.mxu0
        %v479 = vld [vmem:[#allocation3] sm:$0xff]
        %v480 = vld [vmem:[#allocation3 + $0x8] sm:$0xff]
        %v481 = vld [vmem:[#allocation3 + $0x10] sm:$0xff]
        %v482 = vld [vmem:[#allocation3 + $0x18] sm:$0xff]
        %487 = vrot.lane.b32.xlu0 %v461, 1
        %v488 = vpop.permute.xlu0 %487
        %489 = vrot.lane.b32.xlu0 %v466, 1
        %v490 = vpop.permute.xlu0 %489
        %491 = vrot.lane.b32.xlu0 %v471, 1
        %v492 = vpop.permute.xlu0 %491
        %493 = vrot.lane.b32.xlu0 %v476, 1
        %v494 = vpop.permute.xlu0 %493
        %vm499 = vcmask 261120
        %v501 = vsel %vm499, %v479, 0
        %v504 = vsel %vm499, %v480, 0
        %v507 = vsel %vm499, %v481, 0
        %v510 = vsel %vm499, %v482, 0
        %512 = vmatprep.subr.mxu0 0.0
        %513 = vmatpush1.msra.mxu0 %v488
        %514 = vmatprep.subr.mxu0 0.0
        %515 = vmatpush1.msra.mxu0 %v490
        %516 = vmatprep.subr.mxu0 0.0
        %517 = vmatpush1.msra.mxu0 %v492
        %518 = vmatprep.subr.mxu0 0.0
        %519 = vmatpush1.msra.mxu0 %v494
        %520 = vmatprep.subr.mxu0 0.0
        %521 = vmatpush1.msra.mxu0 0.0
        %522 = vmatprep.subr.mxu0 0.0
        %523 = vmatpush1.msra.mxu0 0.0
        %524 = vmatprep.subr.mxu0 0.0
        %525 = vmatpush1.msra.mxu0 0.0
        %526 = vmatprep.subr.mxu0 0.0
        %527 = vmatpush1.msra.mxu0 0.0
        %528 = vmatprep.subr.mxu0 0.0
        %529 = vmatpush1.msra.mxu0 0.0
        %530 = vmatprep.subr.mxu0 0.0
        %531 = vmatpush1.msra.mxu0 0.0
        %532 = vmatprep.subr.mxu0 0.0
        %533 = vmatpush1.msra.mxu0 0.0
        %534 = vmatprep.subr.mxu0 0.0
        %535 = vmatpush1.msra.mxu0 0.0
        %536 = vmatprep.subr.mxu0 0.0
        %537 = vmatpush1.msra.mxu0 0.0
        %538 = vmatprep.subr.mxu0 0.0
        %539 = vmatpush1.msra.mxu0 0.0
        %540 = vmatprep.subr.mxu0 0.0
        %541 = vmatpush1.msra.mxu0 0.0
        %542 = vmatprep.subr.mxu0 0.0
        %543 = vmatpush1.msra.mxu0 0.0
        %544 = vmatprep.subr.mxu0 0.0
        %545 = vmatpush1.msra.mxu0 0.0
        %546 = vmatprep.subr.mxu0 0.0
        %547 = vmatpush1.msra.mxu0 0.0
        %548 = vmatprep.subr.mxu0 0.0
        %549 = vmatpush1.msra.mxu0 0.0
        %550 = vmatprep.subr.mxu0 0.0
        %551 = vmatpush1.msra.mxu0 0.0
        %552 = vmatprep.subr.mxu0 0.0
        %553 = vmatpush1.msra.mxu0 0.0
        %554 = vmatprep.subr.mxu0 0.0
        %555 = vmatpush1.msra.mxu0 0.0
        %556 = vmatprep.subr.mxu0 0.0
        %557 = vmatpush1.msra.mxu0 0.0
        %558 = vmatprep.subr.mxu0 0.0
        %559 = vmatpush1.msra.mxu0 0.0
        %560 = vmatprep.subr.mxu0 0.0
        %561 = vmatpush1.msra.mxu0 0.0
        %562 = vmatprep.subr.mxu0 0.0
        %563 = vmatpush1.msra.mxu0 0.0
        %564 = vmatprep.subr.mxu0 0.0
        %565 = vmatpush1.msra.mxu0 0.0
        %566 = vmatprep.subr.mxu0 0.0
        %567 = vmatpush1.msra.mxu0 0.0
        %568 = vmatprep.subr.mxu0 0.0
        %569 = vmatpush1.msra.mxu0 0.0
        %570 = vmatprep.subr.mxu0 0.0
        %571 = vmatpush1.msra.mxu0 0.0
        %572 = vmatprep.subr.mxu0 0.0
        %573 = vmatpush1.msra.mxu0 0.0
        %574 = vmatprep.subr.mxu0 0.0
        %575 = vmatpush1.msra.mxu0 0.0
        %576 = vmatprep.mubr.f32.mxu0 0.0
        %577 = vmatmul.mubr.f32.gmra.mrb[0].mxu0 %v501
        %v578 = vpop.f32.mrb[0].mxu0
        %v579 = vadd.f32 0.0, %v578
        %v580 = vpop.f32.mrb[0].mxu0
        %581 = vmatprep.mubr.f32.mxu0 0.0
        %582 = vmatmul.mubr.f32.gmra.mrb[0].mxu0 %v504
        %v583 = vpop.f32.mrb[0].mxu0
        %v584 = vadd.f32 0.0, %v583
        %v585 = vpop.f32.mrb[0].mxu0
        %586 = vmatprep.mubr.f32.mxu0 0.0
        %587 = vmatmul.mubr.f32.gmra.mrb[0].mxu0 %v507
        %v588 = vpop.f32.mrb[0].mxu0
        %v589 = vadd.f32 0.0, %v588
        %v590 = vpop.f32.mrb[0].mxu0
        %591 = vmatprep.mubr.f32.mxu0 0.0
        %592 = vmatmul.mubr.f32.gmra.mrb[0].mxu0 %v510
        %v593 = vpop.f32.mrb[0].mxu0
        %v594 = vadd.f32 0.0, %v593
        %v595 = vpop.f32.mrb[0].mxu0
        %596 = vdwg.mxu0
        %598 = vset.pattern.permute.xlu0 0
        %599 = vperm.xlu0 %598, %v579
        %v600 = vpop.permute.xlu0 %599
        %603 = vset.pattern.permute.xlu0 0
        %604 = vperm.xlu0 %603, %v584
        %v605 = vpop.permute.xlu0 %604
        %608 = vset.pattern.permute.xlu0 0
        %609 = vperm.xlu0 %608, %v589
        %v610 = vpop.permute.xlu0 %609
        %613 = vset.pattern.permute.xlu0 0
        %614 = vperm.xlu0 %613, %v594
        %v615 = vpop.permute.xlu0 %614
        %v617 = vadd.f32 %v461, %v600
        %v618 = vadd.f32 %v466, %v605
        %v619 = vadd.f32 %v471, %v610
        %v620 = vadd.f32 %v476, %v615
        %v622 = vlaneseq
        %v623 = vshrl.u32 %v622, 7
        %v624 = vsub.s32 0, %v623
        %v625 = vrot.slane %v322, %v624
        %626 = vset.pattern.permute.xlu0 0
        %627 = vperm.xlu0 %626, %v625
        %v628 = vpop.permute.xlu0 %627
        %v630 = vadd.f32 %v617, %v628
        %v631 = vadd.f32 %v618, %v628
        %v632 = vadd.f32 %v619, %v628
        %v633 = vadd.f32 %v620, %v628
        %v634 = vld [vmem:[#allocation5] sm:$0xff]
        %v635 = vld [vmem:[#allocation5 + $0x8] sm:$0xff]
        %v636 = vld [vmem:[#allocation5 + $0x10] sm:$0xff]
        %v637 = vld [vmem:[#allocation5 + $0x18] sm:$0xff]
        %v638 = vlog2.pop %v630
        %v639 = vmul.f32 %v638, 0.6931472
        %v640 = vlog2.pop %v631
        %v641 = vmul.f32 %v640, 0.6931472
        %v642 = vlog2.pop %v632
        %v643 = vmul.f32 %v642, 0.6931472
        %v644 = vlog2.pop %v633
        %v645 = vmul.f32 %v644, 0.6931472
        %v646 = vsub.f32 %v362, %v639
        %v647 = vsub.f32 %v363, %v641
        %v648 = vsub.f32 %v364, %v643
        %v649 = vsub.f32 %v365, %v645
        %v650 = vmul.f32 %v646, %v366
        %v651 = vmul.f32 %v647, %v367
        %v652 = vmul.f32 %v648, %v368
        %v653 = vmul.f32 %v649, %v369
        %v654 = vadd.f32 %v634, %v650
        %v655 = vadd.f32 %v635, %v651
        %v656 = vadd.f32 %v636, %v652
        %v657 = vadd.f32 %v637, %v653
        %658 = vst [vmem:[#allocation5] sm:$0xff] %v654
        %659 = vst [vmem:[#allocation5 + $0x8] sm:$0xff] %v655
        %660 = vst [vmem:[#allocation5 + $0x10] sm:$0xff] %v656
        %661 = vst [vmem:[#allocation5 + $0x18] sm:$0xff] %v657
        %663 = vrot.lane.b32.xlu0 %v633, 1
        %v664 = vpop.permute.xlu0 %663
        %vm666 = vcmask 7175
        %667 = vst.msk [vmem:[#allocation4 - $0x7] sm:$0x80] %vm666, %v664
        %p668 = scmp.eq.s32.totalorder %s20, 1
        // Predicated region
        $region41: #{tpu_custom_call.1} parent=27 // pred_check
          %p669 = pneg %p668
        $region42: #{tpu_custom_call.1} parent=27 // pred_check_branch
          %671 = sbr.rel (%p669) target = $region44
        $region43: #{tpu_custom_call.1} parent=27 // pred_region
          %v672 = vld [vmem:[#allocation5] sm:$0xff]
          %v673 = vld [vmem:[#allocation5 + $0x8] sm:$0xff]
          %v674 = vld [vmem:[#allocation5 + $0x10] sm:$0xff]
          %v675 = vld [vmem:[#allocation5 + $0x18] sm:$0xff]
          %v676 = vadd.f32 %v672, %v673
          %v677 = vadd.f32 %v676, %v674
          %v678 = vadd.f32 %v677, %v675
          %679 = vadd.xlane.f32.xlu0 %v678
          %v680 = vpop.xlane.xlu0 %679
          %v681 = vrot.slane %v680, 4
          %v682 = vadd.f32 %v680, %v681
          %v683 = vrot.slane %v682, 2
          %v684 = vadd.f32 %v682, %v683
          %v685 = vrot.slane %v684, 1
          %v686 = vadd.f32 %v684, %v685
          %s687 = vtos %v686
          %s688 = ssub.f32 0.0, %s687
          %s689 = scalar_lea.smem [#allocation11], 0
          %690 = sst [smem:[%s689]] %s688
        $region44: #{tpu_custom_call.1} parent=27 // pred_fallthru
          _
        // Predicated region
        $region45: #{tpu_custom_call.1} parent=27 // pred_check
          %p691 = pneg %p85
        $region46: #{tpu_custom_call.1} parent=27 // pred_check_branch
          %693 = sbr.rel (%p691) target = $region48
        $region47: #{tpu_custom_call.1} parent=27 // pred_region
          %s695 = ssub.s32 16, 16
          %696 = vsyncadd [#allocation8], %s695
          %699 = dma.smem_to_hbm [#allocation11], 16, %s2, [#allocation8]
        $region48: #{tpu_custom_call.1} parent=27 // pred_fallthru
          _
        // Predicated region
        $region49: #{tpu_custom_call.1} parent=27 // pred_check
          %p700 = pneg %p85
        $region50: #{tpu_custom_call.1} parent=27 // pred_check_branch
          %702 = sbr.rel (%p700) target = $region52
        $region51: #{tpu_custom_call.1} parent=27 // pred_region
          %703 = dma.done [#allocation8], 16
        $region52: #{tpu_custom_call.1} parent=27 // pred_fallthru
          _
        %704 = sfence
      $region28: #{tpu_custom_call.1} parent=5 // pred_fallthru
        _
      %p705 = scmp.le.s32.totalorder 2, %s15
      // Predicated region
      $region53: #{tpu_custom_call.1} parent=5 // pred_check
        %p706 = pneg %p705
      $region54: #{tpu_custom_call.1} parent=5 // pred_check_branch
        %708 = sbr.rel (%p706) target = $region56
      $region55: #{tpu_custom_call.1} parent=5 // pred_region
        %s709 = ssub.s32 %s15, 2
      $region56: #{tpu_custom_call.1} parent=5 // pred_fallthru
        _
    $region6: #{tpu_custom_call.1} parent=1 // loop_footer
      %s19 = sadd.s32 1, %s15
    $region7: #{tpu_custom_call.1} parent=1 // loop_footer_branch
      %14 = sbr.rel target = $region3
    $region8: #{tpu_custom_call.1} parent=1 // loop_exit
      _
    %710 = vsyncpa [#allocation7], 1
    %s711 = scalar_lea.sflag [#allocation7], 1
    %712 = vsyncpa %s711, 1
    %713 = vsyncpa [#allocation10], 1
    %s714 = scalar_lea.sflag [#allocation10], 1
    %715 = vsyncpa %s714, 1
    %716 = vsyncpa [#allocation8], 1
    %s717 = scalar_lea.sflag [#allocation8], 1
    %718 = vsyncpa %s717, 1

</llo_original>
